<compile_context>
chip_gen: v7x
topology: tpu7x:2x2x1
jax: 0.10.0
libtpu: 0.0.40
codegen_flags: <defaults>
</compile_context>

<pallas_src>
import functools

import jax
import jax.numpy as jnp
import numpy as np
from jax.experimental import pallas as pl
from jax.experimental.pallas import tpu as pltpu


def _round_up(x, m):
    return (x + m - 1) // m * m


def _upsample_conv_kernel(x0_ref, x1_ref, g_ref, b_ref, o_ref, *, Wp, Lo_pad):
    """One (n, d, depth-parity) grid step: the four H/W output parities of one
    output depth slice, each as a single K-stacked MXU matmul."""
    rd = pl.program_id(2)                                  # output depth parity

    # The two original-resolution (zero-padded) depth slabs this slice reads.
    slabs = (x0_ref[0, 0, :, :], x1_ref[0, 0, :, :])       # each (Cp, P) bf16

    bias = b_ref[...]                                      # (Cout, 1) f32

    # 18 distinct tap windows (2 slabs x 3 row-offsets x 3 col-offsets),
    # each computed exactly once (hoisted out of the parity loops).
    win = {}
    for sl in range(2):
        for a in range(3):
            for c in range(3):
                s = a * Wp + c
                win[(sl, a, c)] = slabs[sl][:, s:s + Lo_pad]   # contiguous lane slice

    for rh in range(2):                  # output H parity
        for rw in range(2):              # output W parity
            p = rh * 2 + rw
            # K-stacked RHS: sublane order (ed, eh, ew, cin) -> (8*Cp, Lo_pad)
            rhs = jnp.concatenate(
                [win[(ed, rh + eh, rw + ew)]
                 for ed in range(2) for eh in range(2) for ew in range(2)],
                axis=0)
            g = g_ref[rd, p, :, :]                          # (Cout, 8*Cp) bf16
            acc = jnp.dot(g, rhs, preferred_element_type=jnp.float32)
            # Bias added once at the store; no broadcast materialization.
            o_ref[0, 0, p, :, :] = acc + bias


def upsample_forward(x, conv_w, conv_b):
    """UpSample.forward: nearest 2x upsample of (D, H, W) then Conv3d(3, pad=1).

    x: (N, C, D, H, W) f32, conv_w: (C, C, 3, 3, 3), conv_b: (C,)
    returns (N, C, 2D, 2H, 2W) f32
    """
    N, C, D, H, W = x.shape
    Cout = conv_w.shape[0]
    D2, H2, W2 = 2 * D, 2 * H, 2 * W
    Wp = W + 2
    Lo = H * Wp                                   # valid per-parity output length
    Lo_pad = _round_up(Lo, 128)                   # lane-dense output / windows
    Cp = _round_up(C, 16)                         # bf16-tile-aligned channel axis
    P = _round_up(2 * Wp + 2 + Lo_pad, 128)       # flat padded input plane length

    # ---- input: (N, D+2, Cp, P) zero-padded original, channels on sublanes, ---
    # ---- flattened (padded) spatial plane on lanes, bf16 for the MXU        ---
    xt = jnp.transpose(x, (0, 2, 1, 3, 4))                        # (N, D, C, H, W)
    xt = jnp.pad(xt, ((0, 0), (1, 1), (0, 0), (1, 1), (1, 1)))    # spatial halo
    xt = xt.reshape(N, D + 2, C, (H + 2) * Wp)
    xt = jnp.pad(xt, ((0, 0), (0, 0), (0, Cp - C), (0, P - (H + 2) * Wp)))
    xt = xt.astype(jnp.bfloat16)

    # ---- parity-collapsed, K-stacked weights -------------------------------
    # Along each axis, output parity r reads original offsets {r, r+1}; tap k
    # folds onto offset e via the 0/1 selector S[r, e, k].
    S = jnp.array([[[1, 0, 0], [0, 1, 1]],
                   [[1, 1, 0], [0, 0, 1]]], dtype=conv_w.dtype)    # [r, e, k]
    # G[rd, rh, rw, o, ed, eh, ew, i]
    G = jnp.einsum("abp,cdq,efr,oipqr->aceobdfi", S, S, S, conv_w)
    G = G.reshape(2, 4, Cout, 8, C)
    G = jnp.pad(G, ((0, 0), (0, 0), (0, 0), (0, 0), (0, Cp - C)))  # pad cin
    G = G.reshape(2, 4, Cout, 8 * Cp).astype(jnp.bfloat16)

    b2 = conv_b.reshape(Cout, 1).astype(jnp.float32)

    kernel = functools.partial(_upsample_conv_kernel, Wp=Wp, Lo_pad=Lo_pad)

    out = pl.pallas_call(
        kernel,
        out_shape=jax.ShapeDtypeStruct((N, D2, 4, Cout, Lo_pad), jnp.float32),
        grid=(N, D, 2),
        in_specs=[
            # the two original-depth slabs feeding output depth 2*d + r
            pl.BlockSpec((1, 1, Cp, P), lambda n, d, r: (n, d + r, 0, 0)),
            pl.BlockSpec((1, 1, Cp, P), lambda n, d, r: (n, d + r + 1, 0, 0)),
            # resident collapsed weights: constant block index -> DMA'd once
            pl.BlockSpec((2, 4, Cout, 8 * Cp), lambda n, d, r: (0, 0, 0, 0)),
            pl.BlockSpec((Cout, 1), lambda n, d, r: (0, 0)),
        ],
        out_specs=pl.BlockSpec((1, 1, 4, Cout, Lo_pad),
                               lambda n, d, r: (n, 2 * d + r, 0, 0, 0)),
        compiler_params=pltpu.CompilerParams(
            dimension_semantics=("parallel", "parallel", "parallel"),
            vmem_limit_bytes=64 * 1024 * 1024,
        ),
    )(xt, xt, G, b2)

    # ---- de-interleave parities back to NCDHW (layout glue, left to XLA) -----
    out = out[..., :Lo].reshape(N, D2, 2, 2, Cout, H, Wp)[..., :W]
    out = jnp.transpose(out, (0, 4, 1, 5, 2, 6, 3))      # (N, C, D2, H, rh, W, rw)
    return out.reshape(N, Cout, D2, H2, W2)


# ------------------------- pure-JAX reference ---------------------------------
def upsample_reference(x, w, b):
    xu = jnp.repeat(x, 2, axis=2)
    xu = jnp.repeat(xu, 2, axis=3)
    xu = jnp.repeat(xu, 2, axis=4)
    y = jax.lax.conv_general_dilated(
        xu, w, window_strides=(1, 1, 1), padding=[(1, 1)] * 3,
        dimension_numbers=("NCDHW", "OIDHW", "NCDHW"))
    return y + b.reshape(1, -1, 1, 1, 1)


if __name__ == "__main__":
    key = jax.random.PRNGKey(0)
    kx, kw, kb = jax.random.split(key, 3)

    N, C, D, H, W = 2, 4, 8, 8, 8
    x = jax.random.normal(kx, (N, C, D, H, W), jnp.float32)
    conv_w = 0.05 * jax.random.normal(kw, (C, C, 3, 3, 3), jnp.float32)
    conv_b = 0.05 * jax.random.normal(kb, (C,), jnp.float32)

    out = jax.block_until_ready(upsample_forward(x, conv_w, conv_b))
    ref = jax.block_until_ready(upsample_reference(x, conv_w, conv_b))

    # bf16 MXU inputs with f32 accumulation -> compare with bf16-level tolerance.
    np.testing.assert_allclose(np.asarray(out), np.asarray(ref), rtol=2e-2, atol=2e-2)

    print("KERNEL_OK")
</pallas_src>

<mosaic_0001>
module attributes {stable_mosaic.version = 11 : i64} {
  func.func @_upsample_conv_kernel(%arg0: i32, %arg1: i32, %arg2: i32, %arg3: memref<1x1x16x256xbf16, #tpu.memory_space<vmem>>, %arg4: memref<1x1x16x256xbf16, #tpu.memory_space<vmem>>, %arg5: memref<2x4x4x128xbf16, #tpu.memory_space<vmem>>, %arg6: memref<4x1xf32, #tpu.memory_space<vmem>>, %arg7: memref<1x1x4x4x128xf32, #tpu.memory_space<vmem>>) attributes {dimension_semantics = [#tpu.dimension_semantics<parallel>, #tpu.dimension_semantics<parallel>, #tpu.dimension_semantics<parallel>], iteration_bounds = array<i64: 2, 8, 2>, scalar_prefetch = 0 : i64, scratch_operands = 0 : i64, tpu.core_type = #tpu.core_type<tc>, window_params = [{transform_indices = @transform_0, window_bounds = array<i64: 1, 1, 16, 256>}, {transform_indices = @transform_1, window_bounds = array<i64: 1, 1, 16, 256>}, {pipeline_mode = #tpu.pipeline_mode<synchronous>, transform_indices = @transform_2, window_bounds = array<i64: 2, 4, 4, 128>}, {pipeline_mode = #tpu.pipeline_mode<synchronous>, transform_indices = @transform_3, window_bounds = array<i64: 4, 1>}, {transform_indices = @transform_4, window_bounds = array<i64: 1, 1, 4, 4, 128>}]} {
    %c0 = arith.constant 0 : index
    %c0_0 = arith.constant 0 : index
    %c0_1 = arith.constant 0 : index
    %c0_2 = arith.constant 0 : index
    %0 = vector.load %arg3[%c0, %c0_0, %c0_1, %c0_2] : memref<1x1x16x256xbf16, #tpu.memory_space<vmem>>, vector<1x1x16x256xbf16>
    %1 = vector.shape_cast %0 : vector<1x1x16x256xbf16> to vector<16x256xbf16>
    %c0_3 = arith.constant 0 : index
    %c0_4 = arith.constant 0 : index
    %c0_5 = arith.constant 0 : index
    %c0_6 = arith.constant 0 : index
    %2 = vector.load %arg4[%c0_3, %c0_4, %c0_5, %c0_6] : memref<1x1x16x256xbf16, #tpu.memory_space<vmem>>, vector<1x1x16x256xbf16>
    %3 = vector.shape_cast %2 : vector<1x1x16x256xbf16> to vector<16x256xbf16>
    %c0_7 = arith.constant 0 : index
    %c0_8 = arith.constant 0 : index
    %4 = vector.load %arg6[%c0_7, %c0_8] : memref<4x1xf32, #tpu.memory_space<vmem>>, vector<4x1xf32>
    %5 = vector.extract_strided_slice %1 {offsets = [0, 0], sizes = [16, 128], strides = [1, 1]} : vector<16x256xbf16> to vector<16x128xbf16>
    %6 = vector.extract_strided_slice %1 {offsets = [0, 1], sizes = [16, 128], strides = [1, 1]} : vector<16x256xbf16> to vector<16x128xbf16>
    %7 = vector.extract_strided_slice %1 {offsets = [0, 2], sizes = [16, 128], strides = [1, 1]} : vector<16x256xbf16> to vector<16x128xbf16>
    %8 = vector.extract_strided_slice %1 {offsets = [0, 10], sizes = [16, 128], strides = [1, 1]} : vector<16x256xbf16> to vector<16x128xbf16>
    %9 = vector.extract_strided_slice %1 {offsets = [0, 11], sizes = [16, 128], strides = [1, 1]} : vector<16x256xbf16> to vector<16x128xbf16>
    %10 = vector.extract_strided_slice %1 {offsets = [0, 12], sizes = [16, 128], strides = [1, 1]} : vector<16x256xbf16> to vector<16x128xbf16>
    %11 = vector.extract_strided_slice %1 {offsets = [0, 20], sizes = [16, 128], strides = [1, 1]} : vector<16x256xbf16> to vector<16x128xbf16>
    %12 = vector.extract_strided_slice %1 {offsets = [0, 21], sizes = [16, 128], strides = [1, 1]} : vector<16x256xbf16> to vector<16x128xbf16>
    %13 = vector.extract_strided_slice %1 {offsets = [0, 22], sizes = [16, 128], strides = [1, 1]} : vector<16x256xbf16> to vector<16x128xbf16>
    %14 = vector.extract_strided_slice %3 {offsets = [0, 0], sizes = [16, 128], strides = [1, 1]} : vector<16x256xbf16> to vector<16x128xbf16>
    %15 = vector.extract_strided_slice %3 {offsets = [0, 1], sizes = [16, 128], strides = [1, 1]} : vector<16x256xbf16> to vector<16x128xbf16>
    %16 = vector.extract_strided_slice %3 {offsets = [0, 2], sizes = [16, 128], strides = [1, 1]} : vector<16x256xbf16> to vector<16x128xbf16>
    %17 = vector.extract_strided_slice %3 {offsets = [0, 10], sizes = [16, 128], strides = [1, 1]} : vector<16x256xbf16> to vector<16x128xbf16>
    %18 = vector.extract_strided_slice %3 {offsets = [0, 11], sizes = [16, 128], strides = [1, 1]} : vector<16x256xbf16> to vector<16x128xbf16>
    %19 = vector.extract_strided_slice %3 {offsets = [0, 12], sizes = [16, 128], strides = [1, 1]} : vector<16x256xbf16> to vector<16x128xbf16>
    %20 = vector.extract_strided_slice %3 {offsets = [0, 20], sizes = [16, 128], strides = [1, 1]} : vector<16x256xbf16> to vector<16x128xbf16>
    %21 = vector.extract_strided_slice %3 {offsets = [0, 21], sizes = [16, 128], strides = [1, 1]} : vector<16x256xbf16> to vector<16x128xbf16>
    %22 = vector.extract_strided_slice %3 {offsets = [0, 22], sizes = [16, 128], strides = [1, 1]} : vector<16x256xbf16> to vector<16x128xbf16>
    %23 = tpu.concatenate %5, %6, %8, %9, %14, %15, %17, %18 in 0 : vector<16x128xbf16>, vector<16x128xbf16>, vector<16x128xbf16>, vector<16x128xbf16>, vector<16x128xbf16>, vector<16x128xbf16>, vector<16x128xbf16>, vector<16x128xbf16> -> vector<128x128xbf16>
    %24 = arith.index_cast %arg2 : i32 to index
    %c0_9 = arith.constant 0 : index
    %c0_10 = arith.constant 0 : index
    %c0_11 = arith.constant 0 : index
    %25 = vector.load %arg5[%24, %c0_9, %c0_10, %c0_11] : memref<2x4x4x128xbf16, #tpu.memory_space<vmem>>, vector<1x1x4x128xbf16>
    %26 = vector.shape_cast %25 : vector<1x1x4x128xbf16> to vector<4x128xbf16>
    %cst = arith.constant dense<0.000000e+00> : vector<4x128xf32>
    %27 = tpu.matmul %26, %23, %cst {dimension_numbers = #tpu.dot_dimension_numbers<[1], [0], [0], [1], [0, 0, 1, 1], [], []>} : vector<4x128xbf16>, vector<128x128xbf16>, vector<4x128xf32> -> vector<4x128xf32>
    %28 = vector.broadcast %4 : vector<4x1xf32> to vector<4x128xf32>
    %29 = arith.addf %27, %28 : vector<4x128xf32>
    %c0_12 = arith.constant 0 : index
    %c0_13 = arith.constant 0 : index
    %c0_14 = arith.constant 0 : index
    %c0_15 = arith.constant 0 : index
    %c0_16 = arith.constant 0 : index
    %30 = vector.load %arg7[%c0_12, %c0_13, %c0_14, %c0_15, %c0_16] : memref<1x1x4x4x128xf32, #tpu.memory_space<vmem>>, vector<1x1x1x4x128xf32>
    %31 = vector.shape_cast %30 : vector<1x1x1x4x128xf32> to vector<4x128xf32>
    %32 = vector.shape_cast %29 : vector<4x128xf32> to vector<1x1x1x4x128xf32>
    tpu.vector_store %arg7[%c0_12, %c0_13, %c0_14, %c0_15, %c0_16], %32 {strides = array<i32>} : memref<1x1x4x4x128xf32, #tpu.memory_space<vmem>>, vector<1x1x1x4x128xf32>,
    %33 = tpu.concatenate %6, %7, %9, %10, %15, %16, %18, %19 in 0 : vector<16x128xbf16>, vector<16x128xbf16>, vector<16x128xbf16>, vector<16x128xbf16>, vector<16x128xbf16>, vector<16x128xbf16>, vector<16x128xbf16>, vector<16x128xbf16> -> vector<128x128xbf16>
    %34 = arith.index_cast %arg2 : i32 to index
    %c1 = arith.constant 1 : index
    %c0_17 = arith.constant 0 : index
    %c0_18 = arith.constant 0 : index
    %35 = vector.load %arg5[%34, %c1, %c0_17, %c0_18] : memref<2x4x4x128xbf16, #tpu.memory_space<vmem>>, vector<1x1x4x128xbf16>
    %36 = vector.shape_cast %35 : vector<1x1x4x128xbf16> to vector<4x128xbf16>
    %cst_19 = arith.constant dense<0.000000e+00> : vector<4x128xf32>
    %37 = tpu.matmul %36, %33, %cst_19 {dimension_numbers = #tpu.dot_dimension_numbers<[1], [0], [0], [1], [0, 0, 1, 1], [], []>} : vector<4x128xbf16>, vector<128x128xbf16>, vector<4x128xf32> -> vector<4x128xf32>
    %38 = vector.broadcast %4 : vector<4x1xf32> to vector<4x128xf32>
    %39 = arith.addf %37, %38 : vector<4x128xf32>
    %c0_20 = arith.constant 0 : index
    %c0_21 = arith.constant 0 : index
    %c1_22 = arith.constant 1 : index
    %c0_23 = arith.constant 0 : index
    %c0_24 = arith.constant 0 : index
    %40 = vector.load %arg7[%c0_20, %c0_21, %c1_22, %c0_23, %c0_24] : memref<1x1x4x4x128xf32, #tpu.memory_space<vmem>>, vector<1x1x1x4x128xf32>
    %41 = vector.shape_cast %40 : vector<1x1x1x4x128xf32> to vector<4x128xf32>
    %42 = vector.shape_cast %39 : vector<4x128xf32> to vector<1x1x1x4x128xf32>
    tpu.vector_store %arg7[%c0_20, %c0_21, %c1_22, %c0_23, %c0_24], %42 {strides = array<i32>} : memref<1x1x4x4x128xf32, #tpu.memory_space<vmem>>, vector<1x1x1x4x128xf32>,
    %43 = tpu.concatenate %8, %9, %11, %12, %17, %18, %20, %21 in 0 : vector<16x128xbf16>, vector<16x128xbf16>, vector<16x128xbf16>, vector<16x128xbf16>, vector<16x128xbf16>, vector<16x128xbf16>, vector<16x128xbf16>, vector<16x128xbf16> -> vector<128x128xbf16>
    %44 = arith.index_cast %arg2 : i32 to index
    %c2 = arith.constant 2 : index
    %c0_25 = arith.constant 0 : index
    %c0_26 = arith.constant 0 : index
    %45 = vector.load %arg5[%44, %c2, %c0_25, %c0_26] : memref<2x4x4x128xbf16, #tpu.memory_space<vmem>>, vector<1x1x4x128xbf16>
    %46 = vector.shape_cast %45 : vector<1x1x4x128xbf16> to vector<4x128xbf16>
    %cst_27 = arith.constant dense<0.000000e+00> : vector<4x128xf32>
    %47 = tpu.matmul %46, %43, %cst_27 {dimension_numbers = #tpu.dot_dimension_numbers<[1], [0], [0], [1], [0, 0, 1, 1], [], []>} : vector<4x128xbf16>, vector<128x128xbf16>, vector<4x128xf32> -> vector<4x128xf32>
    %48 = vector.broadcast %4 : vector<4x1xf32> to vector<4x128xf32>
    %49 = arith.addf %47, %48 : vector<4x128xf32>
    %c0_28 = arith.constant 0 : index
    %c0_29 = arith.constant 0 : index
    %c2_30 = arith.constant 2 : index
    %c0_31 = arith.constant 0 : index
    %c0_32 = arith.constant 0 : index
    %50 = vector.load %arg7[%c0_28, %c0_29, %c2_30, %c0_31, %c0_32] : memref<1x1x4x4x128xf32, #tpu.memory_space<vmem>>, vector<1x1x1x4x128xf32>
    %51 = vector.shape_cast %50 : vector<1x1x1x4x128xf32> to vector<4x128xf32>
    %52 = vector.shape_cast %49 : vector<4x128xf32> to vector<1x1x1x4x128xf32>
    tpu.vector_store %arg7[%c0_28, %c0_29, %c2_30, %c0_31, %c0_32], %52 {strides = array<i32>} : memref<1x1x4x4x128xf32, #tpu.memory_space<vmem>>, vector<1x1x1x4x128xf32>,
    %53 = tpu.concatenate %9, %10, %12, %13, %18, %19, %21, %22 in 0 : vector<16x128xbf16>, vector<16x128xbf16>, vector<16x128xbf16>, vector<16x128xbf16>, vector<16x128xbf16>, vector<16x128xbf16>, vector<16x128xbf16>, vector<16x128xbf16> -> vector<128x128xbf16>
    %54 = arith.index_cast %arg2 : i32 to index
    %c3 = arith.constant 3 : index
    %c0_33 = arith.constant 0 : index
    %c0_34 = arith.constant 0 : index
    %55 = vector.load %arg5[%54, %c3, %c0_33, %c0_34] : memref<2x4x4x128xbf16, #tpu.memory_space<vmem>>, vector<1x1x4x128xbf16>
    %56 = vector.shape_cast %55 : vector<1x1x4x128xbf16> to vector<4x128xbf16>
    %cst_35 = arith.constant dense<0.000000e+00> : vector<4x128xf32>
    %57 = tpu.matmul %56, %53, %cst_35 {dimension_numbers = #tpu.dot_dimension_numbers<[1], [0], [0], [1], [0, 0, 1, 1], [], []>} : vector<4x128xbf16>, vector<128x128xbf16>, vector<4x128xf32> -> vector<4x128xf32>
    %58 = vector.broadcast %4 : vector<4x1xf32> to vector<4x128xf32>
    %59 = arith.addf %57, %58 : vector<4x128xf32>
    %c0_36 = arith.constant 0 : index
    %c0_37 = arith.constant 0 : index
    %c3_38 = arith.constant 3 : index
    %c0_39 = arith.constant 0 : index
    %c0_40 = arith.constant 0 : index
    %60 = vector.load %arg7[%c0_36, %c0_37, %c3_38, %c0_39, %c0_40] : memref<1x1x4x4x128xf32, #tpu.memory_space<vmem>>, vector<1x1x1x4x128xf32>
    %61 = vector.shape_cast %60 : vector<1x1x1x4x128xf32> to vector<4x128xf32>
    %62 = vector.shape_cast %59 : vector<4x128xf32> to vector<1x1x1x4x128xf32>
    tpu.vector_store %arg7[%c0_36, %c0_37, %c3_38, %c0_39, %c0_40], %62 {strides = array<i32>} : memref<1x1x4x4x128xf32, #tpu.memory_space<vmem>>, vector<1x1x1x4x128xf32>,
    return
  }
  func.func @transform_0(%arg0: i32, %arg1: i32, %arg2: i32) -> (i32, i32, i32, i32) {
    %0 = arith.addi %arg1, %arg2 : i32
    %c0_i32 = arith.constant 0 : i32
    %c0_i32_0 = arith.constant 0 : i32
    %c0_i32_1 = arith.constant 0 : i32
    return %arg0, %0, %c0_i32, %c0_i32_0 : i32, i32, i32, i32
  }
  func.func @transform_1(%arg0: i32, %arg1: i32, %arg2: i32) -> (i32, i32, i32, i32) {
    %0 = arith.addi %arg1, %arg2 : i32
    %c1_i32 = arith.constant 1 : i32
    %1 = arith.addi %0, %c1_i32 : i32
    %c0_i32 = arith.constant 0 : i32
    %c0_i32_0 = arith.constant 0 : i32
    %c0_i32_1 = arith.constant 0 : i32
    return %arg0, %1, %c0_i32, %c0_i32_0 : i32, i32, i32, i32
  }
  func.func @transform_2(%arg0: i32, %arg1: i32, %arg2: i32) -> (i32, i32, i32, i32) {
    %c0_i32 = arith.constant 0 : i32
    %c0_i32_0 = arith.constant 0 : i32
    %c0_i32_1 = arith.constant 0 : i32
    %c0_i32_2 = arith.constant 0 : i32
    %c0_i32_3 = arith.constant 0 : i32
    return %c0_i32, %c0_i32_0, %c0_i32_1, %c0_i32_2 : i32, i32, i32, i32
  }
  func.func @transform_3(%arg0: i32, %arg1: i32, %arg2: i32) -> (i32, i32) {
    %c0_i32 = arith.constant 0 : i32
    %c0_i32_0 = arith.constant 0 : i32
    %c0_i32_1 = arith.constant 0 : i32
    return %c0_i32, %c0_i32_0 : i32, i32
  }
  func.func @transform_4(%arg0: i32, %arg1: i32, %arg2: i32) -> (i32, i32, i32, i32, i32) {
    %c2_i32 = arith.constant 2 : i32
    %0 = arith.muli %c2_i32, %arg1 : i32
    %1 = arith.addi %0, %arg2 : i32
    %c0_i32 = arith.constant 0 : i32
    %c0_i32_0 = arith.constant 0 : i32
    %c0_i32_1 = arith.constant 0 : i32
    %c0_i32_2 = arith.constant 0 : i32
    return %arg0, %1, %c0_i32, %c0_i32_0, %c0_i32_1 : i32, i32, i32, i32, i32
  }
}

</mosaic_0001>

<llo_original>
// kernel: tpu_custom_call.1
$region0: #{tpu_custom_call.1}
  #allocation0 [shape = 'u32[]', space=smem, size = 0x4, offset = 0x4, fixed_abs, tag = 'smem constant byte address 0x4 - core index']
  #allocation1 [shape = 'u32[144,128]{1,0:T(1,128)}', space=vmem, size = 0x12000, scoped, tag = 'internal scratch']
  %s0 = inlined_call_operand.hbm [shape: bf16[2,10,16,256], index: 0, kind: input, shape index: {}]
  %s1 = inlined_call_operand.hbm [shape: bf16[2,10,16,256], index: 1, kind: input, shape index: {}]
  %s2 = inlined_call_operand.hbm [shape: bf16[2,4,4,128], index: 2, kind: input, shape index: {}]
  %s3 = inlined_call_operand.hbm [shape: f32[4,1], index: 3, kind: input, shape index: {}]
  %s4 = inlined_call_operand.hbm [shape: f32[2,16,4,4,128], index: 4, kind: output, shape index: {}]
  %s5 = sld [smem:[#allocation0]]
  $region65: #{tpu_custom_call.1} parent=0
    _
  %s7 = ssub.s32 1, %s5
  %s8 = scalar_select 0, %s7, %s5
  $region1: #{tpu_custom_call.1} parent=0
    #allocation2 [shape = 'u8[16384]{0}', space=vmem, size = 0x4000, scoped, tag = 'input window, operand 0']
    #allocation3 [shape = 's32[2]{0}', space=sflag, size = 0x8, scoped, tag = 'scoped memory for tpu_custom_call.1']
    #allocation4 [shape = 's32[2]{0}', space=sflag, size = 0x8, scoped, tag = 'scoped memory for tpu_custom_call.1']
    #allocation5 [shape = 'u8[16384]{0}', space=vmem, size = 0x4000, scoped, tag = 'input window, operand 1']
    #allocation6 [shape = 's32[2]{0}', space=sflag, size = 0x8, scoped, tag = 'scoped memory for tpu_custom_call.1']
    #allocation7 [shape = 'u8[8192]{0}', space=vmem, size = 0x2000, scoped, tag = 'input window, operand 2, single buffered']
    #allocation8 [shape = 'u8[2048]{0}', space=vmem, size = 0x800, scoped, tag = 'input window, operand 3, single buffered']
    #allocation9 [shape = 's32[1]{0}', space=sflag, size = 0x4, scoped, tag = 'scoped memory for tpu_custom_call.1']
    #allocation10 [shape = 'u8[16384]{0}', space=vmem, size = 0x4000, scoped, tag = 'output window, operand 0']
    %9 = vsyncpa [#allocation3], 0
    %s10 = scalar_lea.sflag [#allocation3], 1
    %11 = vsyncpa %s10, 0
    %12 = vsyncpa [#allocation6], 0
    %s13 = scalar_lea.sflag [#allocation6], 1
    %14 = vsyncpa %s13, 0
    %15 = vsyncpa [#allocation9], 0
    %16 = vsyncpa [#allocation4], 0
    %s17 = scalar_lea.sflag [#allocation4], 1
    %18 = vsyncpa %s17, 0
    loop: start=0, step=1, limit=34
    $region2: #{tpu_custom_call.1} parent=1 // loop_pre_header
      _
    $region3: #{tpu_custom_call.1} parent=1 // loop_header
      %s20 = sphi 0, %s24
      %p21 = scmp.ge.s32.totalorder %s20, 34
      %s27 = sphi 0, %s46
      %s28 = sphi 0, %s42
      %s29 = sphi 0, %s38
      %s30 = sphi 0, %s27
      %s31 = sphi 0, %s28
      %s32 = sphi 0, %s29
      %s33 = sphi 0, %s30
      %s34 = sphi 0, %s31
      %s35 = sphi 0, %s32
      %s53 = sphi 0, %s55
      %s56 = sphi 0, %s53
      %s57 = sphi 0, %s56
      %s73 = sphi 0, %s57
      %s85 = sphi 0, %s87
      %s88 = sphi 0, %s85
      %s89 = sphi 0, %s88
      %s105 = sphi 0, %s89
      %s109 = sphi 0, %s109
      %s111 = sphi 0, %s109
      %s112 = sphi 0, %s111
      %s126 = sphi 0, %s112
      %s130 = sphi 0, %s130
      %s132 = sphi 0, %s130
      %s133 = sphi 0, %s132
      %s147 = sphi 0, %s133
      %s159 = sphi 0, %s161
      %s162 = sphi 0, %s159
      %s163 = sphi 0, %s162
      %s179 = sphi 0, %s163
    $region4: #{tpu_custom_call.1} parent=1 // loop_header_branch
      %23 = sbr.rel (%p21) target = $region8
    $region5: #{tpu_custom_call.1} parent=1 // loop_body
      %s25 = ssub.s32 %s20, 1
      %s26 = ssub.s32 %s20, 2
      %s36 = sadd.s32 1, %s29
      %p37 = scmp.ge.s32.totalorder %s36, 2
      %s38 = scalar_select %p37, 0, %s36
      %s39 = sadd.s32 1, %s28
      %s40 = scalar_select %p37, %s39, %s28
      %p41 = scmp.ge.s32.totalorder %s40, 8
      %s42 = scalar_select %p41, 0, %s40
      %s43 = sadd.s32 1, %s27
      %s44 = scalar_select %p41, %s43, %s27
      %p45 = scmp.ge.s32.totalorder %s44, 2
      %s46 = scalar_select %p45, 0, %s44
      %s47 = sadd.s32 %s28, %s29
      %s48 = sadd.s32 %s42, %s38
      %s49 = ssub.s32 %s27, %s46
      %s50 = ssub.s32 %s47, %s48
      %s51 = sor.u32 %s49, %s50
      %p52 = scmp.eq.s32.totalorder %s51, 0
      %s54 = sadd.s32 %s53, 1
      %s55 = scalar_select %p52, %s53, %s54
      %p58 = pneg %p52
      %p59 = scmp.eq.s32.totalorder %s20, 31
      %p60 = por %p58, %p59
      %p61 = scmp.ne.s32.totalorder %s53, %s56
      %p62 = scmp.eq.s32.totalorder %s20, 0
      %p63 = por %p61, %p62
      %p64 = scmp.ne.s32.totalorder %s53, %s56
      %p65 = scmp.eq.s32.totalorder %s25, 31
      %p66 = por %p64, %p65
      %p67 = scmp.ne.s32.totalorder %s56, %s57
      %p68 = scmp.eq.s32.totalorder %s25, 0
      %p69 = por %p67, %p68
      %p70 = scmp.ne.s32.totalorder %s56, %s57
      %p71 = scmp.eq.s32.totalorder %s26, 31
      %p72 = por %p70, %p71
      %p74 = scmp.ne.s32.totalorder %s57, %s73
      %p75 = scmp.eq.s32.totalorder %s26, 0
      %p76 = por %p74, %p75
      %s77 = sadd.s32 %s28, %s29
      %s78 = sadd.s32 %s77, 1
      %s79 = sadd.s32 %s42, %s38
      %s80 = sadd.s32 %s79, 1
      %s81 = ssub.s32 %s27, %s46
      %s82 = ssub.s32 %s78, %s80
      %s83 = sor.u32 %s81, %s82
      %p84 = scmp.eq.s32.totalorder %s83, 0
      %s86 = sadd.s32 %s85, 1
      %s87 = scalar_select %p84, %s85, %s86
      %p90 = pneg %p84
      %p91 = scmp.eq.s32.totalorder %s20, 31
      %p92 = por %p90, %p91
      %p93 = scmp.ne.s32.totalorder %s85, %s88
      %p94 = scmp.eq.s32.totalorder %s20, 0
      %p95 = por %p93, %p94
      %p96 = scmp.ne.s32.totalorder %s85, %s88
      %p97 = scmp.eq.s32.totalorder %s25, 31
      %p98 = por %p96, %p97
      %p99 = scmp.ne.s32.totalorder %s88, %s89
      %p100 = scmp.eq.s32.totalorder %s25, 0
      %p101 = por %p99, %p100
      %p102 = scmp.ne.s32.totalorder %s88, %s89
      %p103 = scmp.eq.s32.totalorder %s26, 31
      %p104 = por %p102, %p103
      %p106 = scmp.ne.s32.totalorder %s89, %s105
      %p107 = scmp.eq.s32.totalorder %s26, 0
      %p108 = por %p106, %p107
      %s110 = sadd.s32 %s109, 1
      %p113 = scmp.eq.s32.totalorder %s20, 31
      %p114 = scmp.ne.s32.totalorder %s109, %s111
      %p115 = scmp.eq.s32.totalorder %s20, 0
      %p116 = por %p114, %p115
      %p117 = scmp.ne.s32.totalorder %s109, %s111
      %p118 = scmp.eq.s32.totalorder %s25, 31
      %p119 = por %p117, %p118
      %p120 = scmp.ne.s32.totalorder %s111, %s112
      %p121 = scmp.eq.s32.totalorder %s25, 0
      %p122 = por %p120, %p121
      %p123 = scmp.ne.s32.totalorder %s111, %s112
      %p124 = scmp.eq.s32.totalorder %s26, 31
      %p125 = por %p123, %p124
      %p127 = scmp.ne.s32.totalorder %s112, %s126
      %p128 = scmp.eq.s32.totalorder %s26, 0
      %p129 = por %p127, %p128
      %s131 = sadd.s32 %s130, 1
      %p134 = scmp.eq.s32.totalorder %s20, 31
      %p135 = scmp.ne.s32.totalorder %s130, %s132
      %p136 = scmp.eq.s32.totalorder %s20, 0
      %p137 = por %p135, %p136
      %p138 = scmp.ne.s32.totalorder %s130, %s132
      %p139 = scmp.eq.s32.totalorder %s25, 31
      %p140 = por %p138, %p139
      %p141 = scmp.ne.s32.totalorder %s132, %s133
      %p142 = scmp.eq.s32.totalorder %s25, 0
      %p143 = por %p141, %p142
      %p144 = scmp.ne.s32.totalorder %s132, %s133
      %p145 = scmp.eq.s32.totalorder %s26, 31
      %p146 = por %p144, %p145
      %p148 = scmp.ne.s32.totalorder %s133, %s147
      %p149 = scmp.eq.s32.totalorder %s26, 0
      %p150 = por %p148, %p149
      %s151 = smul.u32 %s28, 2
      %s152 = sadd.s32 %s151, %s29
      %s153 = smul.u32 %s42, 2
      %s154 = sadd.s32 %s153, %s38
      %s155 = ssub.s32 %s27, %s46
      %s156 = ssub.s32 %s152, %s154
      %s157 = sor.u32 %s155, %s156
      %p158 = scmp.eq.s32.totalorder %s157, 0
      %s160 = sadd.s32 %s159, 1
      %s161 = scalar_select %p158, %s159, %s160
      %p164 = pneg %p158
      %p165 = scmp.eq.s32.totalorder %s20, 31
      %p166 = por %p164, %p165
      %p167 = scmp.ne.s32.totalorder %s159, %s162
      %p168 = scmp.eq.s32.totalorder %s20, 0
      %p169 = por %p167, %p168
      %p170 = scmp.ne.s32.totalorder %s159, %s162
      %p171 = scmp.eq.s32.totalorder %s25, 31
      %p172 = por %p170, %p171
      %p173 = scmp.ne.s32.totalorder %s162, %s163
      %p174 = scmp.eq.s32.totalorder %s25, 0
      %p175 = por %p173, %p174
      %p176 = scmp.ne.s32.totalorder %s162, %s163
      %p177 = scmp.eq.s32.totalorder %s26, 31
      %p178 = por %p176, %p177
      %p180 = scmp.ne.s32.totalorder %s163, %s179
      %p181 = scmp.eq.s32.totalorder %s26, 0
      %p182 = por %p180, %p181
      %p183 = scmp.le.s32.totalorder 1, %s20
      %p184 = scmp.lt.s32.totalorder %s20, 33
      %p185 = pnand %p183, %p184
      %p186 = pneg %p185
      // Predicated region
      $region9: #{tpu_custom_call.1} parent=5 // pred_check
        _
      $region10: #{tpu_custom_call.1} parent=5 // pred_check_branch
        %188 = sbr.rel (%p185) target = $region12
      $region11: #{tpu_custom_call.1} parent=5 // pred_region
        %s189 = ssub.s32 %s20, 1
        // Predicated region
        $region13: #{tpu_custom_call.1} parent=11 // pred_check
          %p190 = pneg %p122
        $region14: #{tpu_custom_call.1} parent=11 // pred_check_branch
          %192 = sbr.rel (%p190) target = $region16
        $region15: #{tpu_custom_call.1} parent=11 // pred_region
          %s194 = ssub.s32 256, 256
          %195 = vsyncadd [#allocation6], %s194
          %s196 = sshll.u32 [#allocation7], 4
          %s197 = int_to_ptr.vmem [resolvable:$true] %s196
          %202 = dma.hbm_to_vmem [thread:$0]  %s2, 256, %s197, [#allocation6], 32, 32, 2
        $region16: #{tpu_custom_call.1} parent=11 // pred_fallthru
          _
        // Predicated region
        $region17: #{tpu_custom_call.1} parent=11 // pred_check
          %p203 = pneg %p143
        $region18: #{tpu_custom_call.1} parent=11 // pred_check_branch
          %205 = sbr.rel (%p203) target = $region20
        $region19: #{tpu_custom_call.1} parent=11 // pred_region
          %s207 = ssub.s32 64, 64
          %208 = vsyncadd [#allocation9], %s207
          %s210 = sshll.u32 [#allocation8], 4
          %s211 = int_to_ptr.vmem [resolvable:$true] %s210
          %213 = dma.hbm_to_vmem [thread:$0]  %s3, 64, %s211, [#allocation9]
        $region20: #{tpu_custom_call.1} parent=11 // pred_fallthru
          _
      $region12: #{tpu_custom_call.1} parent=5 // pred_fallthru
        _
      %p214 = scmp.lt.s32.totalorder %s20, 32
      // Predicated region
      $region21: #{tpu_custom_call.1} parent=5 // pred_check
        %p215 = pneg %p214
      $region22: #{tpu_custom_call.1} parent=5 // pred_check_branch
        %217 = sbr.rel (%p215) target = $region24
      $region23: #{tpu_custom_call.1} parent=5 // pred_region
        // Predicated region
        $region25: #{tpu_custom_call.1} parent=23 // pred_check
          %p218 = pneg %p63
        $region26: #{tpu_custom_call.1} parent=23 // pred_check_branch
          %220 = sbr.rel (%p218) target = $region28
        $region27: #{tpu_custom_call.1} parent=23 // pred_region
          %s221 = sand.u32 %s53, 1
          %s222 = scalar_lea.sflag [#allocation3], %s221
          %s223 = sand.u32 %s53, 1
          %s224 = smul.addr %s223, 16
          %s225 = scalar_lea.vmem [#allocation2], %s224
          %s226 = sadd.s32 %s28, %s29
          %s228 = ssub.s32 256, 256
          %229 = vsyncadd %s222, %s228
          %s230 = smul.addr %s226, 4
          %s231 = smul.addr %s27, 40
          %s232 = sadd.s32 %s230, %s231
          %s233 = smul.addr %s232, 64
          %s234 = scalar_lea.hbm %s0, %s233
          %s235 = sshll.u32 %s225, 4
          %s236 = int_to_ptr.vmem [resolvable:$true] %s235
          %241 = dma.hbm_to_vmem [thread:$0]  %s234, 256, %s236, %s222, 128, 128, 8
        $region28: #{tpu_custom_call.1} parent=23 // pred_fallthru
          _
        // Predicated region
        $region29: #{tpu_custom_call.1} parent=23 // pred_check
          %p242 = pneg %p95
        $region30: #{tpu_custom_call.1} parent=23 // pred_check_branch
          %244 = sbr.rel (%p242) target = $region32
        $region31: #{tpu_custom_call.1} parent=23 // pred_region
          %s245 = sand.u32 %s20, 1
          %s246 = scalar_lea.sflag [#allocation6], %s245
          %s247 = sand.u32 %s85, 1
          %s248 = smul.addr %s247, 16
          %s249 = scalar_lea.vmem [#allocation5], %s248
          %s250 = sadd.s32 %s28, %s29
          %s251 = sadd.s32 %s250, 1
          %s253 = ssub.s32 256, 256
          %254 = vsyncadd %s246, %s253
          %s255 = smul.addr %s251, 4
          %s256 = smul.addr %s27, 40
          %s257 = sadd.s32 %s255, %s256
          %s258 = smul.addr %s257, 64
          %s259 = scalar_lea.hbm %s1, %s258
          %s260 = sshll.u32 %s249, 4
          %s261 = int_to_ptr.vmem [resolvable:$true] %s260
          %266 = dma.hbm_to_vmem [thread:$0]  %s259, 256, %s261, %s246, 128, 128, 8
        $region32: #{tpu_custom_call.1} parent=23 // pred_fallthru
          _
      $region24: #{tpu_custom_call.1} parent=5 // pred_fallthru
        _
      %p267 = scmp.le.s32.totalorder 1, %s20
      %p268 = scmp.lt.s32.totalorder %s20, 33
      %p269 = pnand %p267, %p268
      %p270 = pneg %p269
      // Predicated region
      $region33: #{tpu_custom_call.1} parent=5 // pred_check
        _
      $region34: #{tpu_custom_call.1} parent=5 // pred_check_branch
        %272 = sbr.rel (%p269) target = $region36
      $region35: #{tpu_custom_call.1} parent=5 // pred_region
        %s273 = ssub.s32 %s20, 1
        %s274 = sand.u32 %s56, 1
        %s275 = scalar_lea.sflag [#allocation3], %s274
        %s276 = sand.u32 %s56, 1
        %s277 = smul.addr %s276, 16
        %s278 = scalar_lea.vmem [#allocation2], %s277
        // Predicated region
        $region37: #{tpu_custom_call.1} parent=35 // pred_check
          %p279 = pneg %p69
        $region38: #{tpu_custom_call.1} parent=35 // pred_check_branch
          %281 = sbr.rel (%p279) target = $region40
        $region39: #{tpu_custom_call.1} parent=35 // pred_region
          %282 = dma.done %s275, 256
        $region40: #{tpu_custom_call.1} parent=35 // pred_fallthru
          _
        %s283 = sand.u32 %s25, 1
        %s284 = scalar_lea.sflag [#allocation6], %s283
        %s285 = sand.u32 %s88, 1
        %s286 = smul.addr %s285, 16
        %s287 = scalar_lea.vmem [#allocation5], %s286
        // Predicated region
        $region41: #{tpu_custom_call.1} parent=35 // pred_check
          %p288 = pneg %p101
        $region42: #{tpu_custom_call.1} parent=35 // pred_check_branch
          %290 = sbr.rel (%p288) target = $region44
        $region43: #{tpu_custom_call.1} parent=35 // pred_region
          %291 = dma.done %s284, 256
        $region44: #{tpu_custom_call.1} parent=35 // pred_fallthru
          _
        // Predicated region
        $region45: #{tpu_custom_call.1} parent=35 // pred_check
          %p292 = pneg %p122
        $region46: #{tpu_custom_call.1} parent=35 // pred_check_branch
          %294 = sbr.rel (%p292) target = $region48
        $region47: #{tpu_custom_call.1} parent=35 // pred_region
          %295 = dma.done [#allocation6], 256
        $region48: #{tpu_custom_call.1} parent=35 // pred_fallthru
          _
        // Predicated region
        $region49: #{tpu_custom_call.1} parent=35 // pred_check
          %p296 = pneg %p143
        $region50: #{tpu_custom_call.1} parent=35 // pred_check_branch
          %298 = sbr.rel (%p296) target = $region52
        $region51: #{tpu_custom_call.1} parent=35 // pred_region
          %299 = dma.done [#allocation9], 64
        $region52: #{tpu_custom_call.1} parent=35 // pred_fallthru
          _
        %s300 = sand.u32 %s56, 1
        %s301 = scalar_lea.sflag [#allocation3], %s300
        %s302 = sand.u32 %s56, 1
        %s303 = smul.addr %s302, 16
        %s304 = scalar_lea.vmem [#allocation2], %s303
        %p305 = pneg %p69
        %p306 = pneg %p66
        %s307 = sand.u32 %s25, 1
        %s308 = scalar_lea.sflag [#allocation6], %s307
        %s309 = sand.u32 %s88, 1
        %s310 = smul.addr %s309, 16
        %s311 = scalar_lea.vmem [#allocation5], %s310
        %p312 = pneg %p101
        %p313 = pneg %p98
        %p314 = pneg %p122
        %p315 = pneg %p119
        %p316 = pneg %p143
        %p317 = pneg %p140
        %p318 = pneg %p175
        %p319 = pneg %p172
        %s320 = sand.u32 %s162, 1
        %s321 = scalar_lea.sflag [#allocation4], %s320
        %s322 = sand.u32 %s162, 1
        %s323 = smul.addr %s322, 16
        %s324 = scalar_lea.vmem [#allocation10], %s323
        %s325 = sadd.s32 %s31, %s32
        %s326 = sadd.s32 %s31, %s32
        %s327 = sadd.s32 %s326, 1
        %s328 = smul.u32 %s31, 2
        %s329 = sadd.s32 %s328, %s32
        %v331 = vld [vmem:[%s278] sm:$0xff]
        %v332 = vld [vmem:[%s278 + $0x8] sm:$0xff]
        %v333 = vld [vmem:[%s287] sm:$0xff]
        %v334 = vld [vmem:[%s287 + $0x8] sm:$0xff]
        %v335 = vld [vmem:[#allocation8] sm:$0xf]
        %v338 = vunpack.c.l.b16 %v331
        %v339 = vunpack.c.l.b16 %v332
        %v340 = vpack.c.b16 %v339, %v338
        %v342 = vunpack.c.h.b16 %v331
        %v343 = vunpack.c.h.b16 %v332
        %v344 = vpack.c.b16 %v343, %v342
        %345 = vrot.lane.b32.xlu0 %v340, 127
        %v346 = vpop.permute.xlu0 %345
        %347 = vrot.lane.b32.xlu0 %v344, 127
        %v348 = vpop.permute.xlu0 %347
        %vm349 = vcmask 1039360
        %v350 = vsel %vm349, %v346, %v348
        %352 = vrot.lane.b32.xlu0 %v340, 118
        %v353 = vpop.permute.xlu0 %352
        %354 = vrot.lane.b32.xlu0 %v344, 118
        %v355 = vpop.permute.xlu0 %354
        %vm356 = vcmask 965632
        %v357 = vsel %vm356, %v353, %v355
        %359 = vrot.lane.b32.xlu0 %v340, 117
        %v360 = vpop.permute.xlu0 %359
        %361 = vrot.lane.b32.xlu0 %v344, 117
        %v362 = vpop.permute.xlu0 %361
        %vm363 = vcmask 957440
        %v364 = vsel %vm363, %v360, %v362
        %v368 = vunpack.c.l.b16 %v333
        %v369 = vunpack.c.l.b16 %v334
        %v370 = vpack.c.b16 %v369, %v368
        %v372 = vunpack.c.h.b16 %v333
        %v373 = vunpack.c.h.b16 %v334
        %v374 = vpack.c.b16 %v373, %v372
        %375 = vrot.lane.b32.xlu0 %v370, 127
        %v376 = vpop.permute.xlu0 %375
        %377 = vrot.lane.b32.xlu0 %v374, 127
        %v378 = vpop.permute.xlu0 %377
        %v379 = vsel %vm349, %v376, %v378
        %381 = vrot.lane.b32.xlu0 %v370, 118
        %v382 = vpop.permute.xlu0 %381
        %383 = vrot.lane.b32.xlu0 %v374, 118
        %v384 = vpop.permute.xlu0 %383
        %v385 = vsel %vm356, %v382, %v384
        %387 = vrot.lane.b32.xlu0 %v370, 117
        %v388 = vpop.permute.xlu0 %387
        %389 = vrot.lane.b32.xlu0 %v374, 117
        %v390 = vpop.permute.xlu0 %389
        %v391 = vsel %vm363, %v388, %v390
        %s393 = smul.u32 %s32, 4
        %s394 = smul.addr %s393, 2
        %s395 = scalar_lea.vmem [#allocation7], %s394
        %v396 = vld [vmem:[%s395] sm:$0x3]
        %398 = vset.pattern.permute.xlu0 0
        %399 = vperm.xlu0 %398, %v335
        %v400 = vpop.permute.xlu0 %399
        %402 = vmatprep.subr.bf16.mxu0 0
        %403 = vmatpush1.bf16.msra.mxu0 %v340
        %404 = vmatprep.subr.bf16.mxu0 0
        %405 = vmatpush1.bf16.msra.mxu0 %v350
        %406 = vmatprep.subr.bf16.mxu0 0
        %407 = vmatpush1.bf16.msra.mxu0 %v357
        %408 = vmatprep.subr.bf16.mxu0 0
        %409 = vmatpush1.bf16.msra.mxu0 %v364
        %410 = vmatprep.subr.bf16.mxu0 0
        %411 = vmatpush1.bf16.msra.mxu0 %v370
        %412 = vmatprep.subr.bf16.mxu0 0
        %413 = vmatpush1.bf16.msra.mxu0 %v379
        %414 = vmatprep.subr.bf16.mxu0 0
        %415 = vmatpush1.bf16.msra.mxu0 %v385
        %416 = vmatprep.subr.bf16.mxu0 0
        %417 = vmatpush1.bf16.msra.mxu0 %v391
        %418 = vmatprep.subr.bf16.mxu0 0
        %419 = vmatpush1.bf16.msra.mxu0 0
        %420 = vmatprep.subr.bf16.mxu0 0
        %421 = vmatpush1.bf16.msra.mxu0 0
        %422 = vmatprep.subr.bf16.mxu0 0
        %423 = vmatpush1.bf16.msra.mxu0 0
        %424 = vmatprep.subr.bf16.mxu0 0
        %425 = vmatpush1.bf16.msra.mxu0 0
        %426 = vmatprep.subr.bf16.mxu0 0
        %427 = vmatpush1.bf16.msra.mxu0 0
        %428 = vmatprep.subr.bf16.mxu0 0
        %429 = vmatpush1.bf16.msra.mxu0 0
        %430 = vmatprep.subr.bf16.mxu0 0
        %431 = vmatpush1.bf16.msra.mxu0 0
        %432 = vmatprep.subr.bf16.mxu0 0
        %433 = vmatpush1.bf16.msra.mxu0 0
        %434 = vmatprep.mubr.bf16.mxu0 0
        %435 = vmatmul.mubr.bf16.gmra.mrb[0].mxu0 %v396
        %v436 = vpop.f32.mrb[0].mxu0
        %v437 = vadd.f32 %v400, %v436
        %v438 = vpop.f32.mrb[0].mxu0
        %v439 = vpop.f32.mrb[0].mxu0
        %v440 = vpop.f32.mrb[0].mxu0
        %441 = vdwg.mxu0
        %442 = vst [vmem:[%s324] sm:$0xf] %v437
        %s443 = sadd.s32 1, %s393
        %s444 = smul.addr %s443, 2
        %s445 = scalar_lea.vmem [#allocation7], %s444
        %v446 = vld [vmem:[%s445] sm:$0x3]
        %447 = vrot.lane.b32.xlu0 %v350, 127
        %v448 = vpop.permute.xlu0 %447
        %449 = vrot.lane.b32.xlu0 %v348, 127
        %v450 = vpop.permute.xlu0 %449
        %451 = vrot.lane.b32.xlu0 %v357, 127
        %v452 = vpop.permute.xlu0 %451
        %453 = vrot.lane.b32.xlu0 %v355, 127
        %v454 = vpop.permute.xlu0 %453
        %455 = vrot.lane.b32.xlu0 %v364, 127
        %v456 = vpop.permute.xlu0 %455
        %457 = vrot.lane.b32.xlu0 %v362, 127
        %v458 = vpop.permute.xlu0 %457
        %459 = vrot.lane.b32.xlu0 %v379, 127
        %v460 = vpop.permute.xlu0 %459
        %461 = vrot.lane.b32.xlu0 %v378, 127
        %v462 = vpop.permute.xlu0 %461
        %463 = vrot.lane.b32.xlu0 %v385, 127
        %v464 = vpop.permute.xlu0 %463
        %465 = vrot.lane.b32.xlu0 %v384, 127
        %v466 = vpop.permute.xlu0 %465
        %467 = vrot.lane.b32.xlu0 %v391, 127
        %v468 = vpop.permute.xlu0 %467
        %469 = vrot.lane.b32.xlu0 %v390, 127
        %v470 = vpop.permute.xlu0 %469
        %v471 = vsel %vm349, %v448, %v450
        %v472 = vsel %vm349, %v452, %v454
        %v473 = vsel %vm349, %v456, %v458
        %v474 = vsel %vm349, %v460, %v462
        %v475 = vsel %vm349, %v464, %v466
        %v476 = vsel %vm349, %v468, %v470
        %483 = vmatprep.subr.bf16.mxu0 0
        %484 = vmatpush1.bf16.msra.mxu0 %v350
        %485 = vmatprep.subr.bf16.mxu0 0
        %486 = vmatpush1.bf16.msra.mxu0 %v471
        %487 = vmatprep.subr.bf16.mxu0 0
        %488 = vmatpush1.bf16.msra.mxu0 %v472
        %489 = vmatprep.subr.bf16.mxu0 0
        %490 = vmatpush1.bf16.msra.mxu0 %v473
        %491 = vmatprep.subr.bf16.mxu0 0
        %492 = vmatpush1.bf16.msra.mxu0 %v379
        %493 = vmatprep.subr.bf16.mxu0 0
        %494 = vmatpush1.bf16.msra.mxu0 %v474
        %495 = vmatprep.subr.bf16.mxu0 0
        %496 = vmatpush1.bf16.msra.mxu0 %v475
        %497 = vmatprep.subr.bf16.mxu0 0
        %498 = vmatpush1.bf16.msra.mxu0 %v476
        %499 = vmatprep.subr.bf16.mxu0 0
        %500 = vmatpush1.bf16.msra.mxu0 0
        %501 = vmatprep.subr.bf16.mxu0 0
        %502 = vmatpush1.bf16.msra.mxu0 0
        %503 = vmatprep.subr.bf16.mxu0 0
        %504 = vmatpush1.bf16.msra.mxu0 0
        %505 = vmatprep.subr.bf16.mxu0 0
        %506 = vmatpush1.bf16.msra.mxu0 0
        %507 = vmatprep.subr.bf16.mxu0 0
        %508 = vmatpush1.bf16.msra.mxu0 0
        %509 = vmatprep.subr.bf16.mxu0 0
        %510 = vmatpush1.bf16.msra.mxu0 0
        %511 = vmatprep.subr.bf16.mxu0 0
        %512 = vmatpush1.bf16.msra.mxu0 0
        %513 = vmatprep.subr.bf16.mxu0 0
        %514 = vmatpush1.bf16.msra.mxu0 0
        %515 = vmatprep.mubr.bf16.mxu0 0
        %516 = vmatmul.mubr.bf16.gmra.mrb[0].mxu0 %v446
        %v517 = vpop.f32.mrb[0].mxu0
        %v518 = vadd.f32 %v400, %v517
        %v519 = vpop.f32.mrb[0].mxu0
        %v520 = vpop.f32.mrb[0].mxu0
        %v521 = vpop.f32.mrb[0].mxu0
        %522 = vdwg.mxu0
        %s523 = scalar_lea.vmem %s324, 4 [#allocation10]
        %524 = vst [vmem:[%s523] sm:$0xf] %v518
        %s525 = sadd.s32 2, %s393
        %s526 = smul.addr %s525, 2
        %s527 = scalar_lea.vmem [#allocation7], %s526
        %v528 = vld [vmem:[%s527] sm:$0x3]
        %529 = vrot.lane.b32.xlu0 %v350, 118
        %v530 = vpop.permute.xlu0 %529
        %531 = vrot.lane.b32.xlu0 %v348, 118
        %v532 = vpop.permute.xlu0 %531
        %533 = vrot.lane.b32.xlu0 %v357, 118
        %v534 = vpop.permute.xlu0 %533
        %535 = vrot.lane.b32.xlu0 %v355, 118
        %v536 = vpop.permute.xlu0 %535
        %537 = vrot.lane.b32.xlu0 %v364, 118
        %v538 = vpop.permute.xlu0 %537
        %539 = vrot.lane.b32.xlu0 %v362, 118
        %v540 = vpop.permute.xlu0 %539
        %541 = vrot.lane.b32.xlu0 %v379, 118
        %v542 = vpop.permute.xlu0 %541
        %543 = vrot.lane.b32.xlu0 %v378, 118
        %v544 = vpop.permute.xlu0 %543
        %545 = vrot.lane.b32.xlu0 %v385, 118
        %v546 = vpop.permute.xlu0 %545
        %547 = vrot.lane.b32.xlu0 %v384, 118
        %v548 = vpop.permute.xlu0 %547
        %549 = vrot.lane.b32.xlu0 %v391, 118
        %v550 = vpop.permute.xlu0 %549
        %551 = vrot.lane.b32.xlu0 %v390, 118
        %v552 = vpop.permute.xlu0 %551
        %v553 = vsel %vm356, %v530, %v532
        %v554 = vsel %vm356, %v534, %v536
        %v555 = vsel %vm356, %v538, %v540
        %v556 = vsel %vm356, %v542, %v544
        %v557 = vsel %vm356, %v546, %v548
        %v558 = vsel %vm356, %v550, %v552
        %565 = vmatprep.subr.bf16.mxu0 0
        %566 = vmatpush1.bf16.msra.mxu0 %v357
        %567 = vmatprep.subr.bf16.mxu0 0
        %568 = vmatpush1.bf16.msra.mxu0 %v553
        %569 = vmatprep.subr.bf16.mxu0 0
        %570 = vmatpush1.bf16.msra.mxu0 %v554
        %571 = vmatprep.subr.bf16.mxu0 0
        %572 = vmatpush1.bf16.msra.mxu0 %v555
        %573 = vmatprep.subr.bf16.mxu0 0
        %574 = vmatpush1.bf16.msra.mxu0 %v385
        %575 = vmatprep.subr.bf16.mxu0 0
        %576 = vmatpush1.bf16.msra.mxu0 %v556
        %577 = vmatprep.subr.bf16.mxu0 0
        %578 = vmatpush1.bf16.msra.mxu0 %v557
        %579 = vmatprep.subr.bf16.mxu0 0
        %580 = vmatpush1.bf16.msra.mxu0 %v558
        %581 = vmatprep.subr.bf16.mxu0 0
        %582 = vmatpush1.bf16.msra.mxu0 0
        %583 = vmatprep.subr.bf16.mxu0 0
        %584 = vmatpush1.bf16.msra.mxu0 0
        %585 = vmatprep.subr.bf16.mxu0 0
        %586 = vmatpush1.bf16.msra.mxu0 0
        %587 = vmatprep.subr.bf16.mxu0 0
        %588 = vmatpush1.bf16.msra.mxu0 0
        %589 = vmatprep.subr.bf16.mxu0 0
        %590 = vmatpush1.bf16.msra.mxu0 0
        %591 = vmatprep.subr.bf16.mxu0 0
        %592 = vmatpush1.bf16.msra.mxu0 0
        %593 = vmatprep.subr.bf16.mxu0 0
        %594 = vmatpush1.bf16.msra.mxu0 0
        %595 = vmatprep.subr.bf16.mxu0 0
        %596 = vmatpush1.bf16.msra.mxu0 0
        %597 = vmatprep.mubr.bf16.mxu0 0
        %598 = vmatmul.mubr.bf16.gmra.mrb[0].mxu0 %v528
        %v599 = vpop.f32.mrb[0].mxu0
        %v600 = vadd.f32 %v400, %v599
        %v601 = vpop.f32.mrb[0].mxu0
        %v602 = vpop.f32.mrb[0].mxu0
        %v603 = vpop.f32.mrb[0].mxu0
        %604 = vdwg.mxu0
        %s605 = scalar_lea.vmem %s324, 8 [#allocation10]
        %606 = vst [vmem:[%s605] sm:$0xf] %v600
        %s607 = sadd.s32 3, %s393
        %s608 = smul.addr %s607, 2
        %s609 = scalar_lea.vmem [#allocation7], %s608
        %v610 = vld [vmem:[%s609] sm:$0x3]
        %611 = vrot.lane.b32.xlu0 %v350, 117
        %v612 = vpop.permute.xlu0 %611
        %613 = vrot.lane.b32.xlu0 %v348, 117
        %v614 = vpop.permute.xlu0 %613
        %615 = vrot.lane.b32.xlu0 %v357, 117
        %v616 = vpop.permute.xlu0 %615
        %617 = vrot.lane.b32.xlu0 %v355, 117
        %v618 = vpop.permute.xlu0 %617
        %619 = vrot.lane.b32.xlu0 %v364, 117
        %v620 = vpop.permute.xlu0 %619
        %621 = vrot.lane.b32.xlu0 %v362, 117
        %v622 = vpop.permute.xlu0 %621
        %623 = vrot.lane.b32.xlu0 %v379, 117
        %v624 = vpop.permute.xlu0 %623
        %625 = vrot.lane.b32.xlu0 %v378, 117
        %v626 = vpop.permute.xlu0 %625
        %627 = vrot.lane.b32.xlu0 %v385, 117
        %v628 = vpop.permute.xlu0 %627
        %629 = vrot.lane.b32.xlu0 %v384, 117
        %v630 = vpop.permute.xlu0 %629
        %631 = vrot.lane.b32.xlu0 %v391, 117
        %v632 = vpop.permute.xlu0 %631
        %633 = vrot.lane.b32.xlu0 %v390, 117
        %v634 = vpop.permute.xlu0 %633
        %v635 = vsel %vm363, %v612, %v614
        %v636 = vsel %vm363, %v616, %v618
        %v637 = vsel %vm363, %v620, %v622
        %v638 = vsel %vm363, %v624, %v626
        %v639 = vsel %vm363, %v628, %v630
        %v640 = vsel %vm363, %v632, %v634
        %647 = vmatprep.subr.bf16.mxu0 0
        %648 = vmatpush1.bf16.msra.mxu0 %v364
        %649 = vmatprep.subr.bf16.mxu0 0
        %650 = vmatpush1.bf16.msra.mxu0 %v635
        %651 = vmatprep.subr.bf16.mxu0 0
        %652 = vmatpush1.bf16.msra.mxu0 %v636
        %653 = vmatprep.subr.bf16.mxu0 0
        %654 = vmatpush1.bf16.msra.mxu0 %v637
        %655 = vmatprep.subr.bf16.mxu0 0
        %656 = vmatpush1.bf16.msra.mxu0 %v391
        %657 = vmatprep.subr.bf16.mxu0 0
        %658 = vmatpush1.bf16.msra.mxu0 %v638
        %659 = vmatprep.subr.bf16.mxu0 0
        %660 = vmatpush1.bf16.msra.mxu0 %v639
        %661 = vmatprep.subr.bf16.mxu0 0
        %662 = vmatpush1.bf16.msra.mxu0 %v640
        %663 = vmatprep.subr.bf16.mxu0 0
        %664 = vmatpush1.bf16.msra.mxu0 0
        %665 = vmatprep.subr.bf16.mxu0 0
        %666 = vmatpush1.bf16.msra.mxu0 0
        %667 = vmatprep.subr.bf16.mxu0 0
        %668 = vmatpush1.bf16.msra.mxu0 0
        %669 = vmatprep.subr.bf16.mxu0 0
        %670 = vmatpush1.bf16.msra.mxu0 0
        %671 = vmatprep.subr.bf16.mxu0 0
        %672 = vmatpush1.bf16.msra.mxu0 0
        %673 = vmatprep.subr.bf16.mxu0 0
        %674 = vmatpush1.bf16.msra.mxu0 0
        %675 = vmatprep.subr.bf16.mxu0 0
        %676 = vmatpush1.bf16.msra.mxu0 0
        %677 = vmatprep.subr.bf16.mxu0 0
        %678 = vmatpush1.bf16.msra.mxu0 0
        %679 = vmatprep.mubr.bf16.mxu0 0
        %680 = vmatmul.mubr.bf16.gmra.mrb[0].mxu0 %v610
        %v681 = vpop.f32.mrb[0].mxu0
        %v682 = vadd.f32 %v400, %v681
        %v683 = vpop.f32.mrb[0].mxu0
        %v684 = vpop.f32.mrb[0].mxu0
        %v685 = vpop.f32.mrb[0].mxu0
        %686 = vdwg.mxu0
        %s687 = scalar_lea.vmem %s324, 12 [#allocation10]
        %688 = vst [vmem:[%s687] sm:$0xf] %v682
        %s689 = sand.u32 %s162, 1
        %s690 = scalar_lea.sflag [#allocation4], %s689
        %s691 = sand.u32 %s162, 1
        %s692 = smul.addr %s691, 16
        %s693 = scalar_lea.vmem [#allocation10], %s692
        // Predicated region
        $region53: #{tpu_custom_call.1} parent=35 // pred_check
          %p694 = pneg %p172
        $region54: #{tpu_custom_call.1} parent=35 // pred_check_branch
          %696 = sbr.rel (%p694) target = $region56
        $region55: #{tpu_custom_call.1} parent=35 // pred_region
          %s697 = smul.u32 %s31, 2
          %s698 = sadd.s32 %s697, %s32
          %s700 = ssub.s32 256, 256
          %701 = vsyncadd %s690, %s700
          %s702 = smul.addr %s698, 4
          %s703 = smul.addr %s30, 64
          %s704 = sadd.s32 %s702, %s703
          %s705 = smul.addr %s704, 64
          %s706 = scalar_lea.hbm %s4, %s705
          %s707 = sshll.u32 %s693, 4
          %s708 = int_to_ptr.vmem [resolvable:$true] %s707
          %713 = dma.vmem_to_hbm [thread:$0]  %s708, 256, %s706, %s690, 64, 64, 4
        $region56: #{tpu_custom_call.1} parent=35 // pred_fallthru
          _
      $region36: #{tpu_custom_call.1} parent=5 // pred_fallthru
        _
      %p714 = scmp.le.s32.totalorder 2, %s20
      // Predicated region
      $region57: #{tpu_custom_call.1} parent=5 // pred_check
        %p715 = pneg %p714
      $region58: #{tpu_custom_call.1} parent=5 // pred_check_branch
        %717 = sbr.rel (%p715) target = $region60
      $region59: #{tpu_custom_call.1} parent=5 // pred_region
        %s718 = ssub.s32 %s20, 2
        // Predicated region
        $region61: #{tpu_custom_call.1} parent=59 // pred_check
          %p719 = pneg %p178
        $region62: #{tpu_custom_call.1} parent=59 // pred_check_branch
          %721 = sbr.rel (%p719) target = $region64
        $region63: #{tpu_custom_call.1} parent=59 // pred_region
          %s722 = sand.u32 %s163, 1
          %s723 = scalar_lea.sflag [#allocation4], %s722
          %s724 = sand.u32 %s163, 1
          %s725 = smul.addr %s724, 16
          %s726 = scalar_lea.vmem [#allocation10], %s725
          %727 = dma.done %s723, 256
        $region64: #{tpu_custom_call.1} parent=59 // pred_fallthru
          _
      $region60: #{tpu_custom_call.1} parent=5 // pred_fallthru
        _
    $region6: #{tpu_custom_call.1} parent=1 // loop_footer
      %s24 = sadd.s32 1, %s20
    $region7: #{tpu_custom_call.1} parent=1 // loop_footer_branch
      %19 = sbr.rel target = $region3
    $region8: #{tpu_custom_call.1} parent=1 // loop_exit
      _
    %728 = vsyncpa [#allocation3], 1
    %s729 = scalar_lea.sflag [#allocation3], 1
    %730 = vsyncpa %s729, 1
    %731 = vsyncpa [#allocation6], 1
    %s732 = scalar_lea.sflag [#allocation6], 1
    %733 = vsyncpa %s732, 1
    %734 = vsyncpa [#allocation9], 1
    %735 = vsyncpa [#allocation4], 1
    %s736 = scalar_lea.sflag [#allocation4], 1
    %737 = vsyncpa %s736, 1

</llo_original>
